<compile_context>
chip_gen: v7x
topology: tpu7x:2x2x1
jax: 0.10.0
libtpu: 0.0.40
codegen_flags: <defaults>
</compile_context>

<pallas_src>
import math

import jax
import jax.numpy as jnp
from jax.experimental import pallas as pl
from jax.experimental.pallas import tpu as pltpu


def _round_up(x: int, m: int) -> int:
    return (x + m - 1) // m * m


def _cdiv(a: int, b: int) -> int:
    return -(-a // b)


def _tpu_vmem_capacity_bytes() -> int:
    """Per-core VMEM capacity; conservative 64 MiB fallback if unqueryable."""
    try:
        return int(pltpu.get_tpu_info().vmem_capacity_bytes)
    except Exception:
        return 64 << 20  # safe on every generation (v7x has 64 MiB/TC)


def _make_mlp_warp_kernel(num_layers: int, padded_dims, compute_dtype):
    """kernel(x_ref, bias_ref, w1_ref, ..., wL_ref, out_ref)."""

    def kernel(x_ref, b_ref, *rest):
        out_ref = rest[-1]
        w_refs = rest[:num_layers]
        h = x_ref[...]                                   # (TM, d0_pad), compute dtype
        for i in range(num_layers):
            d_out = padded_dims[i + 1]
            # MXU matmul (bf16-native path when compute_dtype=bf16), f32 acc.
            acc = jnp.dot(h, w_refs[i][...], preferred_element_type=jnp.float32)
            # Bias row i: static, lane-aligned slice; broadcast over sublanes.
            acc = acc + b_ref[i:i + 1, :d_out]
            # tanh in f32 on the EUP (portable across v5e/v6e/v7x).
            act = jnp.tanh(acc)
            if i + 1 < num_layers:
                # Cast back to compute dtype only when feeding the next matmul.
                h = act.astype(compute_dtype)
            else:
                h = act                                   # keep f32 for the store
        out_ref[...] = h.astype(out_ref.dtype)

    return kernel


def mlp_warp_pallas(x, weights, biases, *, compute_dtype=jnp.bfloat16,
                    block_m: int | None = None):
    """x: (B, in_d); weights[i]: (d_i, d_{i+1}) (transpose of nn.Linear.weight);
    biases[i]: (d_{i+1},).  Output is returned in x.dtype."""
    num_layers = len(weights)
    assert len(biases) == num_layers
    batch, in_d = x.shape
    dims = [in_d] + [int(w.shape[1]) for w in weights]
    out_d = dims[-1]
    pdims = [_round_up(d, 128) for d in dims]            # lane-dense feature dims

    out_dtype = jnp.dtype(x.dtype)
    compute_dtype = jnp.dtype(compute_dtype)
    itemsize = compute_dtype.itemsize

    # Generation-aware budgets: 85% of physical per-core VMEM for headroom
    # (v5e/v6e ~108 MiB, v7x ~54 MiB); tile width follows the same split.
    vmem_cap = _tpu_vmem_capacity_bytes()
    vmem_budget = int(vmem_cap * 0.85)
    if block_m is None:
        block_m = 512 if vmem_cap >= (96 << 20) else 256

    # Balanced batch tiling: pad to a multiple of 8, then split into the
    # minimum number of <=block_m tiles; padding waste is <8 rows per tile.
    b8 = _round_up(batch, 8)
    n_tiles = max(1, _cdiv(b8, block_m))
    tm = _round_up(_cdiv(b8, n_tiles), 8)
    bp = tm * n_tiles
    grid = (n_tiles,)

    # Zero-pad activations and params to lane-dense shapes (padding is inert:
    # padded weight rows/cols and padded biases are 0 and tanh(0)=0).
    xp = jnp.zeros((bp, pdims[0]), compute_dtype)
    xp = xp.at[:batch, :in_d].set(x.astype(compute_dtype))
    wps = []
    for i, w in enumerate(weights):
        wp = jnp.zeros((pdims[i], pdims[i + 1]), compute_dtype)
        wp = wp.at[:dims[i], :dims[i + 1]].set(jnp.asarray(w, compute_dtype))
        wps.append(wp)
    d_max = max(pdims[1:])
    bias_stack = jnp.zeros((num_layers, d_max), jnp.float32)
    for i, b in enumerate(biases):
        bias_stack = bias_stack.at[i, :dims[i + 1]].set(
            jnp.asarray(b, jnp.float32).reshape(-1))

    kernel = _make_mlp_warp_kernel(num_layers, pdims, compute_dtype)

    weight_bytes = sum(pdims[i] * pdims[i + 1] for i in range(num_layers)) * itemsize
    bias_bytes = _round_up(num_layers, 8) * d_max * 4
    cost = pl.CostEstimate(
        flops=2 * bp * sum(pdims[i] * pdims[i + 1] for i in range(num_layers)),
        transcendentals=bp * sum(pdims[1:]),
        bytes_accessed=(bp * pdims[0] * itemsize
                        + bp * pdims[-1] * out_dtype.itemsize
                        + weight_bytes + bias_bytes),
    )

    def build_and_run(param_buffer_count: int):
        single = param_buffer_count == 1

        def const_spec(shape):
            # Constant index_map -> never re-fetched; single-buffer when allowed.
            if single:
                return pl.BlockSpec(shape, lambda i: (0, 0),
                                    pipeline_mode=pl.Buffered(1))
            return pl.BlockSpec(shape, lambda i: (0, 0))

        x_spec = pl.BlockSpec((tm, pdims[0]), lambda i: (i, 0))
        out_spec = pl.BlockSpec((tm, pdims[-1]), lambda i: (i, 0))
        bias_spec = const_spec((num_layers, d_max))
        w_specs = [const_spec((pdims[i], pdims[i + 1])) for i in range(num_layers)]

        # VMEM accounting with the REAL buffer counts: resident params x
        # buffer_count, double-buffered streamed x/out tiles, f32 temporaries.
        resident_param_bytes = param_buffer_count * (weight_bytes + bias_bytes)
        io_bytes = 2 * tm * (pdims[0] * itemsize + pdims[-1] * out_dtype.itemsize)
        act_bytes = 4 * tm * max(pdims) * 4
        need = resident_param_bytes + io_bytes + act_bytes + (8 << 20)
        vmem_limit = int(min(vmem_budget, max(32 << 20, need)))
        # TODO(synk): when resident_param_bytes exceeds vmem_budget (notably on
        # v7x's 64 MiB/TC with megacore-duplicated weights), stream each layer's
        # weights with an inner pltpu.emit_pipeline over N/K instead of keeping
        # the full stack VMEM-resident.

        return pl.pallas_call(
            kernel,
            out_shape=jax.ShapeDtypeStruct((bp, pdims[-1]), out_dtype),
            grid=grid,
            in_specs=[x_spec, bias_spec] + w_specs,
            out_specs=out_spec,
            compiler_params=pltpu.CompilerParams(
                dimension_semantics=("parallel",),
                vmem_limit_bytes=vmem_limit,
            ),
            cost_estimate=cost,
        )(xp, bias_stack, *wps)

    try:
        out_padded = build_and_run(1)       # single-buffered resident params
    except Exception:
        out_padded = build_and_run(2)       # portable fallback: default pipelining

    return out_padded[:batch, :out_d]


def init_params(key, in_d, hidden_d):
    """Deterministic PyTorch-Linear-style init: U(-1/sqrt(fan_in), 1/sqrt(fan_in))."""
    weights, biases = [], []
    d_in = in_d
    for d_out in hidden_d:
        key, kw, kb = jax.random.split(key, 3)
        bound = 1.0 / math.sqrt(d_in)
        weights.append(jax.random.uniform(kw, (d_in, d_out), jnp.float32, -bound, bound))
        biases.append(jax.random.uniform(kb, (d_out,), jnp.float32, -bound, bound))
        d_in = d_out
    return weights, biases


def mlp_warp_ref(x, weights, biases):
    h = x
    for w, b in zip(weights, biases):
        h = jnp.tanh(
            jnp.dot(h, w, preferred_element_type=jnp.float32,
                    precision=jax.lax.Precision.HIGHEST) + b)
    return h


if __name__ == "__main__":
    key = jax.random.PRNGKey(0)
    key, kx = jax.random.split(key)

    batch = 8
    in_d = 16
    hidden_d = [32, 64, 16]

    x = jax.random.normal(kx, (batch, in_d), jnp.float32)
    weights, biases = init_params(key, in_d, hidden_d)
    ref = mlp_warp_ref(x, weights, biases)

    # Exact path (f32 operands) — tight tolerance vs. f32 reference.
    out_f32 = jax.block_until_ready(
        mlp_warp_pallas(x, weights, biases, compute_dtype=jnp.float32))
    assert out_f32.shape == (batch, hidden_d[-1])
    assert jnp.allclose(out_f32, ref, atol=2e-5, rtol=2e-5), \
        float(jnp.max(jnp.abs(out_f32 - ref)))

    # Default mixed-precision path (bf16 operands, f32 accumulation) — bf16
    # quantization tolerance vs. the f32 reference.
    out_bf16 = jax.block_until_ready(mlp_warp_pallas(x, weights, biases))
    assert out_bf16.shape == (batch, hidden_d[-1])
    assert out_bf16.dtype == x.dtype
    assert jnp.allclose(out_bf16, ref, atol=8e-2, rtol=8e-2), \
        float(jnp.max(jnp.abs(out_bf16 - ref)))

    print("KERNEL_OK")
</pallas_src>

<mosaic_0001>
module attributes {stable_mosaic.version = 11 : i64} {
  func.func @kernel(%arg0: i32, %arg1: memref<8x128xf32, #tpu.memory_space<vmem>>, %arg2: memref<3x128xf32, #tpu.memory_space<vmem>>, %arg3: memref<128x128xf32, #tpu.memory_space<vmem>>, %arg4: memref<128x128xf32, #tpu.memory_space<vmem>>, %arg5: memref<128x128xf32, #tpu.memory_space<vmem>>, %arg6: memref<8x128xf32, #tpu.memory_space<vmem>>) attributes {dimension_semantics = [#tpu.dimension_semantics<parallel>], iteration_bounds = array<i64: 1>, scalar_prefetch = 0 : i64, scratch_operands = 0 : i64, tpu.core_type = #tpu.core_type<tc>, window_params = [{transform_indices = @transform_0, window_bounds = array<i64: 8, 128>}, {pipeline_mode = #tpu.pipeline_mode<synchronous>, transform_indices = @transform_1, window_bounds = array<i64: 3, 128>}, {pipeline_mode = #tpu.pipeline_mode<synchronous>, transform_indices = @transform_2, window_bounds = array<i64: 128, 128>}, {pipeline_mode = #tpu.pipeline_mode<synchronous>, transform_indices = @transform_3, window_bounds = array<i64: 128, 128>}, {pipeline_mode = #tpu.pipeline_mode<synchronous>, transform_indices = @transform_4, window_bounds = array<i64: 128, 128>}, {transform_indices = @transform_5, window_bounds = array<i64: 8, 128>}]} {
    %c0 = arith.constant 0 : index
    %c0_0 = arith.constant 0 : index
    %0 = vector.load %arg1[%c0, %c0_0] : memref<8x128xf32, #tpu.memory_space<vmem>>, vector<8x128xf32>
    %c0_1 = arith.constant 0 : index
    %c0_2 = arith.constant 0 : index
    %1 = vector.load %arg3[%c0_1, %c0_2] : memref<128x128xf32, #tpu.memory_space<vmem>>, vector<128x128xf32>
    %cst = arith.constant dense<0.000000e+00> : vector<8x128xf32>
    %2 = tpu.matmul %0, %1, %cst {dimension_numbers = #tpu.dot_dimension_numbers<[1], [0], [0], [1], [0, 0, 1, 1], [], []>} : vector<8x128xf32>, vector<128x128xf32>, vector<8x128xf32> -> vector<8x128xf32>
    %c0_3 = arith.constant 0 : index
    %c0_4 = arith.constant 0 : index
    %3 = vector.load %arg2[%c0_3, %c0_4] : memref<3x128xf32, #tpu.memory_space<vmem>>, vector<1x128xf32>
    %4 = vector.broadcast %3 : vector<1x128xf32> to vector<8x128xf32>
    %5 = arith.addf %2, %4 : vector<8x128xf32>
    %6 = math.tanh %5 : vector<8x128xf32>
    %c0_5 = arith.constant 0 : index
    %c0_6 = arith.constant 0 : index
    %7 = vector.load %arg4[%c0_5, %c0_6] : memref<128x128xf32, #tpu.memory_space<vmem>>, vector<128x128xf32>
    %cst_7 = arith.constant dense<0.000000e+00> : vector<8x128xf32>
    %8 = tpu.matmul %6, %7, %cst_7 {dimension_numbers = #tpu.dot_dimension_numbers<[1], [0], [0], [1], [0, 0, 1, 1], [], []>} : vector<8x128xf32>, vector<128x128xf32>, vector<8x128xf32> -> vector<8x128xf32>
    %c1 = arith.constant 1 : index
    %c0_8 = arith.constant 0 : index
    %9 = vector.load %arg2[%c1, %c0_8] : memref<3x128xf32, #tpu.memory_space<vmem>>, vector<1x128xf32>
    %10 = vector.broadcast %9 : vector<1x128xf32> to vector<8x128xf32>
    %11 = arith.addf %8, %10 : vector<8x128xf32>
    %12 = math.tanh %11 : vector<8x128xf32>
    %c0_9 = arith.constant 0 : index
    %c0_10 = arith.constant 0 : index
    %13 = vector.load %arg5[%c0_9, %c0_10] : memref<128x128xf32, #tpu.memory_space<vmem>>, vector<128x128xf32>
    %cst_11 = arith.constant dense<0.000000e+00> : vector<8x128xf32>
    %14 = tpu.matmul %12, %13, %cst_11 {dimension_numbers = #tpu.dot_dimension_numbers<[1], [0], [0], [1], [0, 0, 1, 1], [], []>} : vector<8x128xf32>, vector<128x128xf32>, vector<8x128xf32> -> vector<8x128xf32>
    %c2 = arith.constant 2 : index
    %c0_12 = arith.constant 0 : index
    %15 = vector.load %arg2[%c2, %c0_12] : memref<3x128xf32, #tpu.memory_space<vmem>>, vector<1x128xf32>
    %16 = vector.broadcast %15 : vector<1x128xf32> to vector<8x128xf32>
    %17 = arith.addf %14, %16 : vector<8x128xf32>
    %18 = math.tanh %17 : vector<8x128xf32>
    %c0_13 = arith.constant 0 : index
    %c0_14 = arith.constant 0 : index
    %19 = vector.load %arg6[%c0_13, %c0_14] : memref<8x128xf32, #tpu.memory_space<vmem>>, vector<8x128xf32>
    tpu.vector_store %arg6[%c0_13, %c0_14], %18 {strides = array<i32>} : memref<8x128xf32, #tpu.memory_space<vmem>>, vector<8x128xf32>,
    return
  }
  func.func @transform_0(%arg0: i32) -> (i32, i32) {
    %c0_i32 = arith.constant 0 : i32
    %c0_i32_0 = arith.constant 0 : i32
    return %arg0, %c0_i32 : i32, i32
  }
  func.func @transform_1(%arg0: i32) -> (i32, i32) {
    %c0_i32 = arith.constant 0 : i32
    %c0_i32_0 = arith.constant 0 : i32
    %c0_i32_1 = arith.constant 0 : i32
    return %c0_i32, %c0_i32_0 : i32, i32
  }
  func.func @transform_2(%arg0: i32) -> (i32, i32) {
    %c0_i32 = arith.constant 0 : i32
    %c0_i32_0 = arith.constant 0 : i32
    %c0_i32_1 = arith.constant 0 : i32
    return %c0_i32, %c0_i32_0 : i32, i32
  }
  func.func @transform_3(%arg0: i32) -> (i32, i32) {
    %c0_i32 = arith.constant 0 : i32
    %c0_i32_0 = arith.constant 0 : i32
    %c0_i32_1 = arith.constant 0 : i32
    return %c0_i32, %c0_i32_0 : i32, i32
  }
  func.func @transform_4(%arg0: i32) -> (i32, i32) {
    %c0_i32 = arith.constant 0 : i32
    %c0_i32_0 = arith.constant 0 : i32
    %c0_i32_1 = arith.constant 0 : i32
    return %c0_i32, %c0_i32_0 : i32, i32
  }
  func.func @transform_5(%arg0: i32) -> (i32, i32) {
    %c0_i32 = arith.constant 0 : i32
    %c0_i32_0 = arith.constant 0 : i32
    return %arg0, %c0_i32 : i32, i32
  }
}

module attributes {stable_mosaic.version = 11 : i64} {
  func.func @kernel(%arg0: i32, %arg1: memref<8x128xf32, #tpu.memory_space<vmem>>, %arg2: memref<3x128xf32, #tpu.memory_space<vmem>>, %arg3: memref<128x128xf32, #tpu.memory_space<vmem>>, %arg4: memref<128x128xf32, #tpu.memory_space<vmem>>, %arg5: memref<128x128xf32, #tpu.memory_space<vmem>>, %arg6: memref<8x128xf32, #tpu.memory_space<vmem>>) attributes {dimension_semantics = [#tpu.dimension_semantics<parallel>], iteration_bounds = array<i64: 1>, scalar_prefetch = 0 : i64, scratch_operands = 0 : i64, tpu.core_type = #tpu.core_type<tc>, window_params = [{transform_indices = @transform_0, window_bounds = array<i64: 8, 128>}, {pipeline_mode = #tpu.pipeline_mode<synchronous>, transform_indices = @transform_1, window_bounds = array<i64: 3, 128>}, {pipeline_mode = #tpu.pipeline_mode<synchronous>, transform_indices = @transform_2, window_bounds = array<i64: 128, 128>}, {pipeline_mode = #tpu.pipeline_mode<synchronous>, transform_indices = @transform_3, window_bounds = array<i64: 128, 128>}, {pipeline_mode = #tpu.pipeline_mode<synchronous>, transform_indices = @transform_4, window_bounds = array<i64: 128, 128>}, {transform_indices = @transform_5, window_bounds = array<i64: 8, 128>}]} {
    %c0 = arith.constant 0 : index
    %c0_0 = arith.constant 0 : index
    %0 = vector.load %arg1[%c0, %c0_0] : memref<8x128xf32, #tpu.memory_space<vmem>>, vector<8x128xf32>
    %c0_1 = arith.constant 0 : index
    %c0_2 = arith.constant 0 : index
    %1 = vector.load %arg3[%c0_1, %c0_2] : memref<128x128xf32, #tpu.memory_space<vmem>>, vector<128x128xf32>
    %cst = arith.constant dense<0.000000e+00> : vector<8x128xf32>
    %2 = tpu.matmul %0, %1, %cst {dimension_numbers = #tpu.dot_dimension_numbers<[1], [0], [0], [1], [0, 0, 1, 1], [], []>} : vector<8x128xf32>, vector<128x128xf32>, vector<8x128xf32> -> vector<8x128xf32>
    %c0_3 = arith.constant 0 : index
    %c0_4 = arith.constant 0 : index
    %3 = vector.load %arg2[%c0_3, %c0_4] : memref<3x128xf32, #tpu.memory_space<vmem>>, vector<1x128xf32>
    %4 = vector.broadcast %3 : vector<1x128xf32> to vector<8x128xf32>
    %5 = arith.addf %2, %4 : vector<8x128xf32>
    %6 = math.tanh %5 : vector<8x128xf32>
    %c0_5 = arith.constant 0 : index
    %c0_6 = arith.constant 0 : index
    %7 = vector.load %arg4[%c0_5, %c0_6] : memref<128x128xf32, #tpu.memory_space<vmem>>, vector<128x128xf32>
    %cst_7 = arith.constant dense<0.000000e+00> : vector<8x128xf32>
    %8 = tpu.matmul %6, %7, %cst_7 {dimension_numbers = #tpu.dot_dimension_numbers<[1], [0], [0], [1], [0, 0, 1, 1], [], []>} : vector<8x128xf32>, vector<128x128xf32>, vector<8x128xf32> -> vector<8x128xf32>
    %c1 = arith.constant 1 : index
    %c0_8 = arith.constant 0 : index
    %9 = vector.load %arg2[%c1, %c0_8] : memref<3x128xf32, #tpu.memory_space<vmem>>, vector<1x128xf32>
    %10 = vector.broadcast %9 : vector<1x128xf32> to vector<8x128xf32>
    %11 = arith.addf %8, %10 : vector<8x128xf32>
    %12 = math.tanh %11 : vector<8x128xf32>
    %c0_9 = arith.constant 0 : index
    %c0_10 = arith.constant 0 : index
    %13 = vector.load %arg5[%c0_9, %c0_10] : memref<128x128xf32, #tpu.memory_space<vmem>>, vector<128x128xf32>
    %cst_11 = arith.constant dense<0.000000e+00> : vector<8x128xf32>
    %14 = tpu.matmul %12, %13, %cst_11 {dimension_numbers = #tpu.dot_dimension_numbers<[1], [0], [0], [1], [0, 0, 1, 1], [], []>} : vector<8x128xf32>, vector<128x128xf32>, vector<8x128xf32> -> vector<8x128xf32>
    %c2 = arith.constant 2 : index
    %c0_12 = arith.constant 0 : index
    %15 = vector.load %arg2[%c2, %c0_12] : memref<3x128xf32, #tpu.memory_space<vmem>>, vector<1x128xf32>
    %16 = vector.broadcast %15 : vector<1x128xf32> to vector<8x128xf32>
    %17 = arith.addf %14, %16 : vector<8x128xf32>
    %18 = math.tanh %17 : vector<8x128xf32>
    %c0_13 = arith.constant 0 : index
    %c0_14 = arith.constant 0 : index
    %19 = vector.load %arg6[%c0_13, %c0_14] : memref<8x128xf32, #tpu.memory_space<vmem>>, vector<8x128xf32>
    tpu.vector_store %arg6[%c0_13, %c0_14], %18 {strides = array<i32>} : memref<8x128xf32, #tpu.memory_space<vmem>>, vector<8x128xf32>,
    return
  }
  func.func @transform_0(%arg0: i32) -> (i32, i32) {
    %c0_i32 = arith.constant 0 : i32
    %c0_i32_0 = arith.constant 0 : i32
    return %arg0, %c0_i32 : i32, i32
  }
  func.func @transform_1(%arg0: i32) -> (i32, i32) {
    %c0_i32 = arith.constant 0 : i32
    %c0_i32_0 = arith.constant 0 : i32
    %c0_i32_1 = arith.constant 0 : i32
    return %c0_i32, %c0_i32_0 : i32, i32
  }
  func.func @transform_2(%arg0: i32) -> (i32, i32) {
    %c0_i32 = arith.constant 0 : i32
    %c0_i32_0 = arith.constant 0 : i32
    %c0_i32_1 = arith.constant 0 : i32
    return %c0_i32, %c0_i32_0 : i32, i32
  }
  func.func @transform_3(%arg0: i32) -> (i32, i32) {
    %c0_i32 = arith.constant 0 : i32
    %c0_i32_0 = arith.constant 0 : i32
    %c0_i32_1 = arith.constant 0 : i32
    return %c0_i32, %c0_i32_0 : i32, i32
  }
  func.func @transform_4(%arg0: i32) -> (i32, i32) {
    %c0_i32 = arith.constant 0 : i32
    %c0_i32_0 = arith.constant 0 : i32
    %c0_i32_1 = arith.constant 0 : i32
    return %c0_i32, %c0_i32_0 : i32, i32
  }
  func.func @transform_5(%arg0: i32) -> (i32, i32) {
    %c0_i32 = arith.constant 0 : i32
    %c0_i32_0 = arith.constant 0 : i32
    return %arg0, %c0_i32 : i32, i32
  }
}

</mosaic_0001>

<llo_original>
// kernel: tpu_custom_call.1
$region0: #{tpu_custom_call.1}
  #allocation0 [shape = 'u32[]', space=smem, size = 0x4, offset = 0x4, fixed_abs, tag = 'smem constant byte address 0x4 - core index']
  #allocation1 [shape = 'u32[144,128]{1,0:T(1,128)}', space=vmem, size = 0x12000, scoped, tag = 'internal scratch']
  %s0 = inlined_call_operand.hbm [shape: f32[8,128], index: 0, kind: input, shape index: {}]
  %s1 = inlined_call_operand.hbm [shape: f32[3,128], index: 1, kind: input, shape index: {}]
  %s2 = inlined_call_operand.hbm [shape: f32[128,128], index: 2, kind: input, shape index: {}]
  %s3 = inlined_call_operand.hbm [shape: f32[128,128], index: 3, kind: input, shape index: {}]
  %s4 = inlined_call_operand.hbm [shape: f32[128,128], index: 4, kind: input, shape index: {}]
  %s5 = inlined_call_operand.hbm [shape: f32[8,128], index: 5, kind: output, shape index: {}]
  %s6 = sld [smem:[#allocation0]]
  $region50: #{tpu_custom_call.1} parent=0
    _
  %s8 = ssub.s32 1, %s6
  %s9 = scalar_select 0, %s8, %s6
  $region1: #{tpu_custom_call.1} parent=0
    #allocation2 [shape = 'u8[4096]{0}', space=vmem, size = 0x1000, scoped, tag = 'input window, operand 0, single buffered']
    #allocation3 [shape = 's32[1]{0}', space=sflag, size = 0x4, scoped, tag = 'scoped memory for tpu_custom_call.1']
    #allocation4 [shape = 's32[1]{0}', space=sflag, size = 0x4, scoped, tag = 'scoped memory for tpu_custom_call.1']
    #allocation5 [shape = 'u8[2048]{0}', space=vmem, size = 0x800, scoped, tag = 'input window, operand 1, single buffered']
    #allocation6 [shape = 's32[1]{0}', space=sflag, size = 0x4, scoped, tag = 'scoped memory for tpu_custom_call.1']
    #allocation7 [shape = 'u8[65536]{0}', space=vmem, size = 0x10000, scoped, tag = 'input window, operand 2, single buffered']
    #allocation8 [shape = 'u8[65536]{0}', space=vmem, size = 0x10000, scoped, tag = 'input window, operand 3, single buffered']
    #allocation9 [shape = 's32[1]{0}', space=sflag, size = 0x4, scoped, tag = 'scoped memory for tpu_custom_call.1']
    #allocation10 [shape = 'u8[65536]{0}', space=vmem, size = 0x10000, scoped, tag = 'input window, operand 4, single buffered']
    #allocation11 [shape = 'u8[4096]{0}', space=vmem, size = 0x1000, scoped, tag = 'output window, operand 0, single buffered']
    %10 = vsyncpa [#allocation3], 0
    %11 = vsyncpa [#allocation6], 0
    %12 = vsyncpa [#allocation9], 0
    %13 = vsyncpa [#allocation4], 0
    // Predicated region
    $region2: #{tpu_custom_call.1} parent=1 // pred_check
      _
    $region3: #{tpu_custom_call.1} parent=1 // pred_check_branch
      %15 = sbr.rel (0) target = $region5
    $region4: #{tpu_custom_call.1} parent=1 // pred_region
      %s17 = ssub.s32 128, 128
      %18 = vsyncadd [#allocation3], %s17
      %s20 = sshll.u32 [#allocation2], 4
      %s21 = int_to_ptr.vmem [resolvable:$true] %s20
      %23 = dma.hbm_to_vmem [thread:$0]  %s0, 128, %s21, [#allocation3]
    $region5: #{tpu_custom_call.1} parent=1 // pred_fallthru
      _
    // Predicated region
    $region6: #{tpu_custom_call.1} parent=1 // pred_check
      _
    $region7: #{tpu_custom_call.1} parent=1 // pred_check_branch
      %25 = sbr.rel (0) target = $region9
    $region8: #{tpu_custom_call.1} parent=1 // pred_region
      %s27 = ssub.s32 64, 64
      %28 = vsyncadd [#allocation6], %s27
      %s30 = sshll.u32 [#allocation5], 4
      %s31 = int_to_ptr.vmem [resolvable:$true] %s30
      %33 = dma.hbm_to_vmem [thread:$0]  %s1, 64, %s31, [#allocation6]
    $region9: #{tpu_custom_call.1} parent=1 // pred_fallthru
      _
    // Predicated region
    $region10: #{tpu_custom_call.1} parent=1 // pred_check
      _
    $region11: #{tpu_custom_call.1} parent=1 // pred_check_branch
      %35 = sbr.rel (0) target = $region13
    $region12: #{tpu_custom_call.1} parent=1 // pred_region
      %s37 = ssub.s32 2048, 2048
      %38 = vsyncadd [#allocation6], %s37
      %s39 = sshll.u32 [#allocation7], 4
      %s40 = int_to_ptr.vmem [resolvable:$true] %s39
      %45 = dma.hbm_to_vmem [thread:$0]  %s2, 2048, %s40, [#allocation6], 128, 128, 8
    $region13: #{tpu_custom_call.1} parent=1 // pred_fallthru
      _
    // Predicated region
    $region14: #{tpu_custom_call.1} parent=1 // pred_check
      _
    $region15: #{tpu_custom_call.1} parent=1 // pred_check_branch
      %47 = sbr.rel (0) target = $region17
    $region16: #{tpu_custom_call.1} parent=1 // pred_region
      %s49 = ssub.s32 2048, 2048
      %50 = vsyncadd [#allocation9], %s49
      %s51 = sshll.u32 [#allocation8], 4
      %s52 = int_to_ptr.vmem [resolvable:$true] %s51
      %57 = dma.hbm_to_vmem [thread:$0]  %s3, 2048, %s52, [#allocation9], 128, 128, 8
    $region17: #{tpu_custom_call.1} parent=1 // pred_fallthru
      _
    // Predicated region
    $region18: #{tpu_custom_call.1} parent=1 // pred_check
      _
    $region19: #{tpu_custom_call.1} parent=1 // pred_check_branch
      %59 = sbr.rel (0) target = $region21
    $region20: #{tpu_custom_call.1} parent=1 // pred_region
      %s61 = ssub.s32 2048, 2048
      %62 = vsyncadd [#allocation9], %s61
      %s63 = sshll.u32 [#allocation10], 4
      %s64 = int_to_ptr.vmem [resolvable:$true] %s63
      %69 = dma.hbm_to_vmem [thread:$0]  %s4, 2048, %s64, [#allocation9], 128, 128, 8
    $region21: #{tpu_custom_call.1} parent=1 // pred_fallthru
      _
    // Predicated region
    $region22: #{tpu_custom_call.1} parent=1 // pred_check
      _
    $region23: #{tpu_custom_call.1} parent=1 // pred_check_branch
      %71 = sbr.rel (0) target = $region25
    $region24: #{tpu_custom_call.1} parent=1 // pred_region
      %72 = dma.done [#allocation3], 128
    $region25: #{tpu_custom_call.1} parent=1 // pred_fallthru
      _
    // Predicated region
    $region26: #{tpu_custom_call.1} parent=1 // pred_check
      _
    $region27: #{tpu_custom_call.1} parent=1 // pred_check_branch
      %74 = sbr.rel (0) target = $region29
    $region28: #{tpu_custom_call.1} parent=1 // pred_region
      %75 = dma.done [#allocation6], 64
    $region29: #{tpu_custom_call.1} parent=1 // pred_fallthru
      _
    // Predicated region
    $region30: #{tpu_custom_call.1} parent=1 // pred_check
      _
    $region31: #{tpu_custom_call.1} parent=1 // pred_check_branch
      %77 = sbr.rel (0) target = $region33
    $region32: #{tpu_custom_call.1} parent=1 // pred_region
      %78 = dma.done [#allocation6], 2048
    $region33: #{tpu_custom_call.1} parent=1 // pred_fallthru
      _
    // Predicated region
    $region34: #{tpu_custom_call.1} parent=1 // pred_check
      _
    $region35: #{tpu_custom_call.1} parent=1 // pred_check_branch
      %80 = sbr.rel (0) target = $region37
    $region36: #{tpu_custom_call.1} parent=1 // pred_region
      %81 = dma.done [#allocation9], 2048
    $region37: #{tpu_custom_call.1} parent=1 // pred_fallthru
      _
    // Predicated region
    $region38: #{tpu_custom_call.1} parent=1 // pred_check
      _
    $region39: #{tpu_custom_call.1} parent=1 // pred_check_branch
      %83 = sbr.rel (0) target = $region41
    $region40: #{tpu_custom_call.1} parent=1 // pred_region
      %84 = dma.done [#allocation9], 2048
    $region41: #{tpu_custom_call.1} parent=1 // pred_fallthru
      _
    %v85 = vld [vmem:[#allocation2] sm:$0xff]
    %v86 = vld [vmem:[#allocation7] sm:$0xff]
    %v87 = vld [vmem:[#allocation7 + $0x8] sm:$0xff]
    %v88 = vld [vmem:[#allocation7 + $0x10] sm:$0xff]
    %v89 = vld [vmem:[#allocation7 + $0x18] sm:$0xff]
    %v90 = vld [vmem:[#allocation7 + $0x20] sm:$0xff]
    %v91 = vld [vmem:[#allocation7 + $0x28] sm:$0xff]
    %v92 = vld [vmem:[#allocation7 + $0x30] sm:$0xff]
    %v93 = vld [vmem:[#allocation7 + $0x38] sm:$0xff]
    %v94 = vld [vmem:[#allocation7 + $0x40] sm:$0xff]
    %v95 = vld [vmem:[#allocation7 + $0x48] sm:$0xff]
    %v96 = vld [vmem:[#allocation7 + $0x50] sm:$0xff]
    %v97 = vld [vmem:[#allocation7 + $0x58] sm:$0xff]
    %v98 = vld [vmem:[#allocation7 + $0x60] sm:$0xff]
    %v99 = vld [vmem:[#allocation7 + $0x68] sm:$0xff]
    %v100 = vld [vmem:[#allocation7 + $0x70] sm:$0xff]
    %v101 = vld [vmem:[#allocation7 + $0x78] sm:$0xff]
    %v102 = vld [vmem:[#allocation5] sm:$0x1]
    %v103 = vlaneseq
    %v104 = vshrl.u32 %v103, 7
    %v105 = vsub.s32 0, %v104
    %v106 = vrot.slane %v102, %v105
    %107 = vmatprep.subr.mxu0 0.0
    %108 = vmatpush1.msra.mxu0 %v86
    %109 = vmatprep.subr.mxu0 0.0
    %110 = vmatpush1.msra.mxu0 %v87
    %111 = vmatprep.subr.mxu0 0.0
    %112 = vmatpush1.msra.mxu0 %v88
    %113 = vmatprep.subr.mxu0 0.0
    %114 = vmatpush1.msra.mxu0 %v89
    %115 = vmatprep.subr.mxu0 0.0
    %116 = vmatpush1.msra.mxu0 %v90
    %117 = vmatprep.subr.mxu0 0.0
    %118 = vmatpush1.msra.mxu0 %v91
    %119 = vmatprep.subr.mxu0 0.0
    %120 = vmatpush1.msra.mxu0 %v92
    %121 = vmatprep.subr.mxu0 0.0
    %122 = vmatpush1.msra.mxu0 %v93
    %123 = vmatprep.subr.mxu0 0.0
    %124 = vmatpush1.msra.mxu0 %v94
    %125 = vmatprep.subr.mxu0 0.0
    %126 = vmatpush1.msra.mxu0 %v95
    %127 = vmatprep.subr.mxu0 0.0
    %128 = vmatpush1.msra.mxu0 %v96
    %129 = vmatprep.subr.mxu0 0.0
    %130 = vmatpush1.msra.mxu0 %v97
    %131 = vmatprep.subr.mxu0 0.0
    %132 = vmatpush1.msra.mxu0 %v98
    %133 = vmatprep.subr.mxu0 0.0
    %134 = vmatpush1.msra.mxu0 %v99
    %135 = vmatprep.subr.mxu0 0.0
    %136 = vmatpush1.msra.mxu0 %v100
    %137 = vmatprep.subr.mxu0 0.0
    %138 = vmatpush1.msra.mxu0 %v101
    %139 = vmatprep.subr.mxu0 0.0
    %140 = vmatpush1.msra.mxu0 0.0
    %141 = vmatprep.subr.mxu0 0.0
    %142 = vmatpush1.msra.mxu0 0.0
    %143 = vmatprep.subr.mxu0 0.0
    %144 = vmatpush1.msra.mxu0 0.0
    %145 = vmatprep.subr.mxu0 0.0
    %146 = vmatpush1.msra.mxu0 0.0
    %147 = vmatprep.subr.mxu0 0.0
    %148 = vmatpush1.msra.mxu0 0.0
    %149 = vmatprep.subr.mxu0 0.0
    %150 = vmatpush1.msra.mxu0 0.0
    %151 = vmatprep.subr.mxu0 0.0
    %152 = vmatpush1.msra.mxu0 0.0
    %153 = vmatprep.subr.mxu0 0.0
    %154 = vmatpush1.msra.mxu0 0.0
    %155 = vmatprep.subr.mxu0 0.0
    %156 = vmatpush1.msra.mxu0 0.0
    %157 = vmatprep.subr.mxu0 0.0
    %158 = vmatpush1.msra.mxu0 0.0
    %159 = vmatprep.subr.mxu0 0.0
    %160 = vmatpush1.msra.mxu0 0.0
    %161 = vmatprep.subr.mxu0 0.0
    %162 = vmatpush1.msra.mxu0 0.0
    %163 = vmatprep.subr.mxu0 0.0
    %164 = vmatpush1.msra.mxu0 0.0
    %165 = vmatprep.subr.mxu0 0.0
    %166 = vmatpush1.msra.mxu0 0.0
    %167 = vmatprep.subr.mxu0 0.0
    %168 = vmatpush1.msra.mxu0 0.0
    %169 = vmatprep.subr.mxu0 0.0
    %170 = vmatpush1.msra.mxu0 0.0
    %171 = vmatprep.mubr.f32.mxu0 0.0
    %172 = vmatmul.mubr.f32.gmra.mrb[0].mxu0 %v85
    %v173 = vpop.f32.mrb[0].mxu0
    %v174 = vadd.f32 %v106, %v173
    %v175 = vpop.f32.mrb[0].mxu0
    %176 = vdwg.mxu0
    %v177 = vtanh.pop %v174
    %v178 = vld [vmem:[#allocation8] sm:$0xff]
    %v179 = vld [vmem:[#allocation8 + $0x8] sm:$0xff]
    %v180 = vld [vmem:[#allocation8 + $0x10] sm:$0xff]
    %v181 = vld [vmem:[#allocation8 + $0x18] sm:$0xff]
    %v182 = vld [vmem:[#allocation8 + $0x20] sm:$0xff]
    %v183 = vld [vmem:[#allocation8 + $0x28] sm:$0xff]
    %v184 = vld [vmem:[#allocation8 + $0x30] sm:$0xff]
    %v185 = vld [vmem:[#allocation8 + $0x38] sm:$0xff]
    %v186 = vld [vmem:[#allocation8 + $0x40] sm:$0xff]
    %v187 = vld [vmem:[#allocation8 + $0x48] sm:$0xff]
    %v188 = vld [vmem:[#allocation8 + $0x50] sm:$0xff]
    %v189 = vld [vmem:[#allocation8 + $0x58] sm:$0xff]
    %v190 = vld [vmem:[#allocation8 + $0x60] sm:$0xff]
    %v191 = vld [vmem:[#allocation8 + $0x68] sm:$0xff]
    %v192 = vld [vmem:[#allocation8 + $0x70] sm:$0xff]
    %v193 = vld [vmem:[#allocation8 + $0x78] sm:$0xff]
    %v194 = vld [vmem:[#allocation5 + $0x1] sm:$0x1]
    %v195 = vlaneseq
    %v196 = vshrl.u32 %v195, 7
    %v197 = vsub.s32 0, %v196
    %v198 = vrot.slane %v194, %v197
    %199 = vmatprep.subr.mxu0 0.0
    %200 = vmatpush1.msra.mxu0 %v178
    %201 = vmatprep.subr.mxu0 0.0
    %202 = vmatpush1.msra.mxu0 %v179
    %203 = vmatprep.subr.mxu0 0.0
    %204 = vmatpush1.msra.mxu0 %v180
    %205 = vmatprep.subr.mxu0 0.0
    %206 = vmatpush1.msra.mxu0 %v181
    %207 = vmatprep.subr.mxu0 0.0
    %208 = vmatpush1.msra.mxu0 %v182
    %209 = vmatprep.subr.mxu0 0.0
    %210 = vmatpush1.msra.mxu0 %v183
    %211 = vmatprep.subr.mxu0 0.0
    %212 = vmatpush1.msra.mxu0 %v184
    %213 = vmatprep.subr.mxu0 0.0
    %214 = vmatpush1.msra.mxu0 %v185
    %215 = vmatprep.subr.mxu0 0.0
    %216 = vmatpush1.msra.mxu0 %v186
    %217 = vmatprep.subr.mxu0 0.0
    %218 = vmatpush1.msra.mxu0 %v187
    %219 = vmatprep.subr.mxu0 0.0
    %220 = vmatpush1.msra.mxu0 %v188
    %221 = vmatprep.subr.mxu0 0.0
    %222 = vmatpush1.msra.mxu0 %v189
    %223 = vmatprep.subr.mxu0 0.0
    %224 = vmatpush1.msra.mxu0 %v190
    %225 = vmatprep.subr.mxu0 0.0
    %226 = vmatpush1.msra.mxu0 %v191
    %227 = vmatprep.subr.mxu0 0.0
    %228 = vmatpush1.msra.mxu0 %v192
    %229 = vmatprep.subr.mxu0 0.0
    %230 = vmatpush1.msra.mxu0 %v193
    %231 = vmatprep.subr.mxu0 0.0
    %232 = vmatpush1.msra.mxu0 0.0
    %233 = vmatprep.subr.mxu0 0.0
    %234 = vmatpush1.msra.mxu0 0.0
    %235 = vmatprep.subr.mxu0 0.0
    %236 = vmatpush1.msra.mxu0 0.0
    %237 = vmatprep.subr.mxu0 0.0
    %238 = vmatpush1.msra.mxu0 0.0
    %239 = vmatprep.subr.mxu0 0.0
    %240 = vmatpush1.msra.mxu0 0.0
    %241 = vmatprep.subr.mxu0 0.0
    %242 = vmatpush1.msra.mxu0 0.0
    %243 = vmatprep.subr.mxu0 0.0
    %244 = vmatpush1.msra.mxu0 0.0
    %245 = vmatprep.subr.mxu0 0.0
    %246 = vmatpush1.msra.mxu0 0.0
    %247 = vmatprep.subr.mxu0 0.0
    %248 = vmatpush1.msra.mxu0 0.0
    %249 = vmatprep.subr.mxu0 0.0
    %250 = vmatpush1.msra.mxu0 0.0
    %251 = vmatprep.subr.mxu0 0.0
    %252 = vmatpush1.msra.mxu0 0.0
    %253 = vmatprep.subr.mxu0 0.0
    %254 = vmatpush1.msra.mxu0 0.0
    %255 = vmatprep.subr.mxu0 0.0
    %256 = vmatpush1.msra.mxu0 0.0
    %257 = vmatprep.subr.mxu0 0.0
    %258 = vmatpush1.msra.mxu0 0.0
    %259 = vmatprep.subr.mxu0 0.0
    %260 = vmatpush1.msra.mxu0 0.0
    %261 = vmatprep.subr.mxu0 0.0
    %262 = vmatpush1.msra.mxu0 0.0
    %263 = vmatprep.mubr.f32.mxu0 0.0
    %264 = vmatmul.mubr.f32.gmra.mrb[0].mxu0 %v177
    %v265 = vpop.f32.mrb[0].mxu0
    %v266 = vadd.f32 %v198, %v265
    %v267 = vpop.f32.mrb[0].mxu0
    %268 = vdwg.mxu0
    %v269 = vtanh.pop %v266
    %v270 = vld [vmem:[#allocation10] sm:$0xff]
    %v271 = vld [vmem:[#allocation10 + $0x8] sm:$0xff]
    %v272 = vld [vmem:[#allocation10 + $0x10] sm:$0xff]
    %v273 = vld [vmem:[#allocation10 + $0x18] sm:$0xff]
    %v274 = vld [vmem:[#allocation10 + $0x20] sm:$0xff]
    %v275 = vld [vmem:[#allocation10 + $0x28] sm:$0xff]
    %v276 = vld [vmem:[#allocation10 + $0x30] sm:$0xff]
    %v277 = vld [vmem:[#allocation10 + $0x38] sm:$0xff]
    %v278 = vld [vmem:[#allocation10 + $0x40] sm:$0xff]
    %v279 = vld [vmem:[#allocation10 + $0x48] sm:$0xff]
    %v280 = vld [vmem:[#allocation10 + $0x50] sm:$0xff]
    %v281 = vld [vmem:[#allocation10 + $0x58] sm:$0xff]
    %v282 = vld [vmem:[#allocation10 + $0x60] sm:$0xff]
    %v283 = vld [vmem:[#allocation10 + $0x68] sm:$0xff]
    %v284 = vld [vmem:[#allocation10 + $0x70] sm:$0xff]
    %v285 = vld [vmem:[#allocation10 + $0x78] sm:$0xff]
    %v286 = vld [vmem:[#allocation5 + $0x2] sm:$0x1]
    %v287 = vlaneseq
    %v288 = vshrl.u32 %v287, 7
    %v289 = vsub.s32 0, %v288
    %v290 = vrot.slane %v286, %v289
    %291 = vmatprep.subr.mxu0 0.0
    %292 = vmatpush1.msra.mxu0 %v270
    %293 = vmatprep.subr.mxu0 0.0
    %294 = vmatpush1.msra.mxu0 %v271
    %295 = vmatprep.subr.mxu0 0.0
    %296 = vmatpush1.msra.mxu0 %v272
    %297 = vmatprep.subr.mxu0 0.0
    %298 = vmatpush1.msra.mxu0 %v273
    %299 = vmatprep.subr.mxu0 0.0
    %300 = vmatpush1.msra.mxu0 %v274
    %301 = vmatprep.subr.mxu0 0.0
    %302 = vmatpush1.msra.mxu0 %v275
    %303 = vmatprep.subr.mxu0 0.0
    %304 = vmatpush1.msra.mxu0 %v276
    %305 = vmatprep.subr.mxu0 0.0
    %306 = vmatpush1.msra.mxu0 %v277
    %307 = vmatprep.subr.mxu0 0.0
    %308 = vmatpush1.msra.mxu0 %v278
    %309 = vmatprep.subr.mxu0 0.0
    %310 = vmatpush1.msra.mxu0 %v279
    %311 = vmatprep.subr.mxu0 0.0
    %312 = vmatpush1.msra.mxu0 %v280
    %313 = vmatprep.subr.mxu0 0.0
    %314 = vmatpush1.msra.mxu0 %v281
    %315 = vmatprep.subr.mxu0 0.0
    %316 = vmatpush1.msra.mxu0 %v282
    %317 = vmatprep.subr.mxu0 0.0
    %318 = vmatpush1.msra.mxu0 %v283
    %319 = vmatprep.subr.mxu0 0.0
    %320 = vmatpush1.msra.mxu0 %v284
    %321 = vmatprep.subr.mxu0 0.0
    %322 = vmatpush1.msra.mxu0 %v285
    %323 = vmatprep.subr.mxu0 0.0
    %324 = vmatpush1.msra.mxu0 0.0
    %325 = vmatprep.subr.mxu0 0.0
    %326 = vmatpush1.msra.mxu0 0.0
    %327 = vmatprep.subr.mxu0 0.0
    %328 = vmatpush1.msra.mxu0 0.0
    %329 = vmatprep.subr.mxu0 0.0
    %330 = vmatpush1.msra.mxu0 0.0
    %331 = vmatprep.subr.mxu0 0.0
    %332 = vmatpush1.msra.mxu0 0.0
    %333 = vmatprep.subr.mxu0 0.0
    %334 = vmatpush1.msra.mxu0 0.0
    %335 = vmatprep.subr.mxu0 0.0
    %336 = vmatpush1.msra.mxu0 0.0
    %337 = vmatprep.subr.mxu0 0.0
    %338 = vmatpush1.msra.mxu0 0.0
    %339 = vmatprep.subr.mxu0 0.0
    %340 = vmatpush1.msra.mxu0 0.0
    %341 = vmatprep.subr.mxu0 0.0
    %342 = vmatpush1.msra.mxu0 0.0
    %343 = vmatprep.subr.mxu0 0.0
    %344 = vmatpush1.msra.mxu0 0.0
    %345 = vmatprep.subr.mxu0 0.0
    %346 = vmatpush1.msra.mxu0 0.0
    %347 = vmatprep.subr.mxu0 0.0
    %348 = vmatpush1.msra.mxu0 0.0
    %349 = vmatprep.subr.mxu0 0.0
    %350 = vmatpush1.msra.mxu0 0.0
    %351 = vmatprep.subr.mxu0 0.0
    %352 = vmatpush1.msra.mxu0 0.0
    %353 = vmatprep.subr.mxu0 0.0
    %354 = vmatpush1.msra.mxu0 0.0
    %355 = vmatprep.mubr.f32.mxu0 0.0
    %356 = vmatmul.mubr.f32.gmra.mrb[0].mxu0 %v269
    %v357 = vpop.f32.mrb[0].mxu0
    %v358 = vadd.f32 %v290, %v357
    %v359 = vpop.f32.mrb[0].mxu0
    %360 = vdwg.mxu0
    %v361 = vtanh.pop %v358
    %362 = vst [vmem:[#allocation11] sm:$0xff] %v361
    // Predicated region
    $region42: #{tpu_custom_call.1} parent=1 // pred_check
      _
    $region43: #{tpu_custom_call.1} parent=1 // pred_check_branch
      %364 = sbr.rel (0) target = $region45
    $region44: #{tpu_custom_call.1} parent=1 // pred_region
      %s366 = ssub.s32 128, 128
      %367 = vsyncadd [#allocation4], %s366
      %s369 = sshll.u32 [#allocation11], 4
      %s370 = int_to_ptr.vmem [resolvable:$true] %s369
      %372 = dma.vmem_to_hbm [thread:$0]  %s370, 128, %s5, [#allocation4]
    $region45: #{tpu_custom_call.1} parent=1 // pred_fallthru
      _
    // Predicated region
    $region46: #{tpu_custom_call.1} parent=1 // pred_check
      _
    $region47: #{tpu_custom_call.1} parent=1 // pred_check_branch
      %374 = sbr.rel (0) target = $region49
    $region48: #{tpu_custom_call.1} parent=1 // pred_region
      %375 = dma.done [#allocation4], 128
    $region49: #{tpu_custom_call.1} parent=1 // pred_fallthru
      _
    %376 = vsyncpa [#allocation3], 1
    %377 = vsyncpa [#allocation6], 1
    %378 = vsyncpa [#allocation9], 1
    %379 = vsyncpa [#allocation4], 1

// kernel: tpu_custom_call.1
$region0: #{tpu_custom_call.1}
  #allocation0 [shape = 'u32[]', space=smem, size = 0x4, offset = 0x4, fixed_abs, tag = 'smem constant byte address 0x4 - core index']
  #allocation1 [shape = 'u32[144,128]{1,0:T(1,128)}', space=vmem, size = 0x12000, scoped, tag = 'internal scratch']
  %s0 = inlined_call_operand.hbm [shape: f32[8,128], index: 0, kind: input, shape index: {}]
  %s1 = inlined_call_operand.hbm [shape: f32[3,128], index: 1, kind: input, shape index: {}]
  %s2 = inlined_call_operand.hbm [shape: f32[128,128], index: 2, kind: input, shape index: {}]
  %s3 = inlined_call_operand.hbm [shape: f32[128,128], index: 3, kind: input, shape index: {}]
  %s4 = inlined_call_operand.hbm [shape: f32[128,128], index: 4, kind: input, shape index: {}]
  %s5 = inlined_call_operand.hbm [shape: f32[8,128], index: 5, kind: output, shape index: {}]
  %s6 = sld [smem:[#allocation0]]
  $region50: #{tpu_custom_call.1} parent=0
    _
  %s8 = ssub.s32 1, %s6
  %s9 = scalar_select 0, %s8, %s6
  $region1: #{tpu_custom_call.1} parent=0
    #allocation2 [shape = 'u8[4096]{0}', space=vmem, size = 0x1000, scoped, tag = 'input window, operand 0, single buffered']
    #allocation3 [shape = 's32[1]{0}', space=sflag, size = 0x4, scoped, tag = 'scoped memory for tpu_custom_call.1']
    #allocation4 [shape = 's32[1]{0}', space=sflag, size = 0x4, scoped, tag = 'scoped memory for tpu_custom_call.1']
    #allocation5 [shape = 'u8[2048]{0}', space=vmem, size = 0x800, scoped, tag = 'input window, operand 1, single buffered']
    #allocation6 [shape = 's32[1]{0}', space=sflag, size = 0x4, scoped, tag = 'scoped memory for tpu_custom_call.1']
    #allocation7 [shape = 'u8[65536]{0}', space=vmem, size = 0x10000, scoped, tag = 'input window, operand 2, single buffered']
    #allocation8 [shape = 'u8[65536]{0}', space=vmem, size = 0x10000, scoped, tag = 'input window, operand 3, single buffered']
    #allocation9 [shape = 's32[1]{0}', space=sflag, size = 0x4, scoped, tag = 'scoped memory for tpu_custom_call.1']
    #allocation10 [shape = 'u8[65536]{0}', space=vmem, size = 0x10000, scoped, tag = 'input window, operand 4, single buffered']
    #allocation11 [shape = 'u8[4096]{0}', space=vmem, size = 0x1000, scoped, tag = 'output window, operand 0, single buffered']
    %10 = vsyncpa [#allocation3], 0
    %11 = vsyncpa [#allocation6], 0
    %12 = vsyncpa [#allocation9], 0
    %13 = vsyncpa [#allocation4], 0
    // Predicated region
    $region2: #{tpu_custom_call.1} parent=1 // pred_check
      _
    $region3: #{tpu_custom_call.1} parent=1 // pred_check_branch
      %15 = sbr.rel (0) target = $region5
    $region4: #{tpu_custom_call.1} parent=1 // pred_region
      %s17 = ssub.s32 128, 128
      %18 = vsyncadd [#allocation3], %s17
      %s20 = sshll.u32 [#allocation2], 4
      %s21 = int_to_ptr.vmem [resolvable:$true] %s20
      %23 = dma.hbm_to_vmem [thread:$0]  %s0, 128, %s21, [#allocation3]
    $region5: #{tpu_custom_call.1} parent=1 // pred_fallthru
      _
    // Predicated region
    $region6: #{tpu_custom_call.1} parent=1 // pred_check
      _
    $region7: #{tpu_custom_call.1} parent=1 // pred_check_branch
      %25 = sbr.rel (0) target = $region9
    $region8: #{tpu_custom_call.1} parent=1 // pred_region
      %s27 = ssub.s32 64, 64
      %28 = vsyncadd [#allocation6], %s27
      %s30 = sshll.u32 [#allocation5], 4
      %s31 = int_to_ptr.vmem [resolvable:$true] %s30
      %33 = dma.hbm_to_vmem [thread:$0]  %s1, 64, %s31, [#allocation6]
    $region9: #{tpu_custom_call.1} parent=1 // pred_fallthru
      _
    // Predicated region
    $region10: #{tpu_custom_call.1} parent=1 // pred_check
      _
    $region11: #{tpu_custom_call.1} parent=1 // pred_check_branch
      %35 = sbr.rel (0) target = $region13
    $region12: #{tpu_custom_call.1} parent=1 // pred_region
      %s37 = ssub.s32 2048, 2048
      %38 = vsyncadd [#allocation6], %s37
      %s39 = sshll.u32 [#allocation7], 4
      %s40 = int_to_ptr.vmem [resolvable:$true] %s39
      %45 = dma.hbm_to_vmem [thread:$0]  %s2, 2048, %s40, [#allocation6], 128, 128, 8
    $region13: #{tpu_custom_call.1} parent=1 // pred_fallthru
      _
    // Predicated region
    $region14: #{tpu_custom_call.1} parent=1 // pred_check
      _
    $region15: #{tpu_custom_call.1} parent=1 // pred_check_branch
      %47 = sbr.rel (0) target = $region17
    $region16: #{tpu_custom_call.1} parent=1 // pred_region
      %s49 = ssub.s32 2048, 2048
      %50 = vsyncadd [#allocation9], %s49
      %s51 = sshll.u32 [#allocation8], 4
      %s52 = int_to_ptr.vmem [resolvable:$true] %s51
      %57 = dma.hbm_to_vmem [thread:$0]  %s3, 2048, %s52, [#allocation9], 128, 128, 8
    $region17: #{tpu_custom_call.1} parent=1 // pred_fallthru
      _
    // Predicated region
    $region18: #{tpu_custom_call.1} parent=1 // pred_check
      _
    $region19: #{tpu_custom_call.1} parent=1 // pred_check_branch
      %59 = sbr.rel (0) target = $region21
    $region20: #{tpu_custom_call.1} parent=1 // pred_region
      %s61 = ssub.s32 2048, 2048
      %62 = vsyncadd [#allocation9], %s61
      %s63 = sshll.u32 [#allocation10], 4
      %s64 = int_to_ptr.vmem [resolvable:$true] %s63
      %69 = dma.hbm_to_vmem [thread:$0]  %s4, 2048, %s64, [#allocation9], 128, 128, 8
    $region21: #{tpu_custom_call.1} parent=1 // pred_fallthru
      _
    // Predicated region
    $region22: #{tpu_custom_call.1} parent=1 // pred_check
      _
    $region23: #{tpu_custom_call.1} parent=1 // pred_check_branch
      %71 = sbr.rel (0) target = $region25
    $region24: #{tpu_custom_call.1} parent=1 // pred_region
      %72 = dma.done [#allocation3], 128
    $region25: #{tpu_custom_call.1} parent=1 // pred_fallthru
      _
    // Predicated region
    $region26: #{tpu_custom_call.1} parent=1 // pred_check
      _
    $region27: #{tpu_custom_call.1} parent=1 // pred_check_branch
      %74 = sbr.rel (0) target = $region29
    $region28: #{tpu_custom_call.1} parent=1 // pred_region
      %75 = dma.done [#allocation6], 64
    $region29: #{tpu_custom_call.1} parent=1 // pred_fallthru
      _
    // Predicated region
    $region30: #{tpu_custom_call.1} parent=1 // pred_check
      _
    $region31: #{tpu_custom_call.1} parent=1 // pred_check_branch
      %77 = sbr.rel (0) target = $region33
    $region32: #{tpu_custom_call.1} parent=1 // pred_region
      %78 = dma.done [#allocation6], 2048
    $region33: #{tpu_custom_call.1} parent=1 // pred_fallthru
      _
    // Predicated region
    $region34: #{tpu_custom_call.1} parent=1 // pred_check
      _
    $region35: #{tpu_custom_call.1} parent=1 // pred_check_branch
      %80 = sbr.rel (0) target = $region37
    $region36: #{tpu_custom_call.1} parent=1 // pred_region
      %81 = dma.done [#allocation9], 2048
    $region37: #{tpu_custom_call.1} parent=1 // pred_fallthru
      _
    // Predicated region
    $region38: #{tpu_custom_call.1} parent=1 // pred_check
      _
    $region39: #{tpu_custom_call.1} parent=1 // pred_check_branch
      %83 = sbr.rel (0) target = $region41
    $region40: #{tpu_custom_call.1} parent=1 // pred_region
      %84 = dma.done [#allocation9], 2048
    $region41: #{tpu_custom_call.1} parent=1 // pred_fallthru
      _
    %v85 = vld [vmem:[#allocation2] sm:$0xff]
    %v86 = vld [vmem:[#allocation7] sm:$0xff]
    %v87 = vld [vmem:[#allocation7 + $0x8] sm:$0xff]
    %v88 = vld [vmem:[#allocation7 + $0x10] sm:$0xff]
    %v89 = vld [vmem:[#allocation7 + $0x18] sm:$0xff]
    %v90 = vld [vmem:[#allocation7 + $0x20] sm:$0xff]
    %v91 = vld [vmem:[#allocation7 + $0x28] sm:$0xff]
    %v92 = vld [vmem:[#allocation7 + $0x30] sm:$0xff]
    %v93 = vld [vmem:[#allocation7 + $0x38] sm:$0xff]
    %v94 = vld [vmem:[#allocation7 + $0x40] sm:$0xff]
    %v95 = vld [vmem:[#allocation7 + $0x48] sm:$0xff]
    %v96 = vld [vmem:[#allocation7 + $0x50] sm:$0xff]
    %v97 = vld [vmem:[#allocation7 + $0x58] sm:$0xff]
    %v98 = vld [vmem:[#allocation7 + $0x60] sm:$0xff]
    %v99 = vld [vmem:[#allocation7 + $0x68] sm:$0xff]
    %v100 = vld [vmem:[#allocation7 + $0x70] sm:$0xff]
    %v101 = vld [vmem:[#allocation7 + $0x78] sm:$0xff]
    %v102 = vld [vmem:[#allocation5] sm:$0x1]
    %v103 = vlaneseq
    %v104 = vshrl.u32 %v103, 7
    %v105 = vsub.s32 0, %v104
    %v106 = vrot.slane %v102, %v105
    %107 = vmatprep.subr.mxu0 0.0
    %108 = vmatpush1.msra.mxu0 %v86
    %109 = vmatprep.subr.mxu0 0.0
    %110 = vmatpush1.msra.mxu0 %v87
    %111 = vmatprep.subr.mxu0 0.0
    %112 = vmatpush1.msra.mxu0 %v88
    %113 = vmatprep.subr.mxu0 0.0
    %114 = vmatpush1.msra.mxu0 %v89
    %115 = vmatprep.subr.mxu0 0.0
    %116 = vmatpush1.msra.mxu0 %v90
    %117 = vmatprep.subr.mxu0 0.0
    %118 = vmatpush1.msra.mxu0 %v91
    %119 = vmatprep.subr.mxu0 0.0
    %120 = vmatpush1.msra.mxu0 %v92
    %121 = vmatprep.subr.mxu0 0.0
    %122 = vmatpush1.msra.mxu0 %v93
    %123 = vmatprep.subr.mxu0 0.0
    %124 = vmatpush1.msra.mxu0 %v94
    %125 = vmatprep.subr.mxu0 0.0
    %126 = vmatpush1.msra.mxu0 %v95
    %127 = vmatprep.subr.mxu0 0.0
    %128 = vmatpush1.msra.mxu0 %v96
    %129 = vmatprep.subr.mxu0 0.0
    %130 = vmatpush1.msra.mxu0 %v97
    %131 = vmatprep.subr.mxu0 0.0
    %132 = vmatpush1.msra.mxu0 %v98
    %133 = vmatprep.subr.mxu0 0.0
    %134 = vmatpush1.msra.mxu0 %v99
    %135 = vmatprep.subr.mxu0 0.0
    %136 = vmatpush1.msra.mxu0 %v100
    %137 = vmatprep.subr.mxu0 0.0
    %138 = vmatpush1.msra.mxu0 %v101
    %139 = vmatprep.subr.mxu0 0.0
    %140 = vmatpush1.msra.mxu0 0.0
    %141 = vmatprep.subr.mxu0 0.0
    %142 = vmatpush1.msra.mxu0 0.0
    %143 = vmatprep.subr.mxu0 0.0
    %144 = vmatpush1.msra.mxu0 0.0
    %145 = vmatprep.subr.mxu0 0.0
    %146 = vmatpush1.msra.mxu0 0.0
    %147 = vmatprep.subr.mxu0 0.0
    %148 = vmatpush1.msra.mxu0 0.0
    %149 = vmatprep.subr.mxu0 0.0
    %150 = vmatpush1.msra.mxu0 0.0
    %151 = vmatprep.subr.mxu0 0.0
    %152 = vmatpush1.msra.mxu0 0.0
    %153 = vmatprep.subr.mxu0 0.0
    %154 = vmatpush1.msra.mxu0 0.0
    %155 = vmatprep.subr.mxu0 0.0
    %156 = vmatpush1.msra.mxu0 0.0
    %157 = vmatprep.subr.mxu0 0.0
    %158 = vmatpush1.msra.mxu0 0.0
    %159 = vmatprep.subr.mxu0 0.0
    %160 = vmatpush1.msra.mxu0 0.0
    %161 = vmatprep.subr.mxu0 0.0
    %162 = vmatpush1.msra.mxu0 0.0
    %163 = vmatprep.subr.mxu0 0.0
    %164 = vmatpush1.msra.mxu0 0.0
    %165 = vmatprep.subr.mxu0 0.0
    %166 = vmatpush1.msra.mxu0 0.0
    %167 = vmatprep.subr.mxu0 0.0
    %168 = vmatpush1.msra.mxu0 0.0
    %169 = vmatprep.subr.mxu0 0.0
    %170 = vmatpush1.msra.mxu0 0.0
    %171 = vmatprep.mubr.f32.mxu0 0.0
    %172 = vmatmul.mubr.f32.gmra.mrb[0].mxu0 %v85
    %v173 = vpop.f32.mrb[0].mxu0
    %v174 = vadd.f32 %v106, %v173
    %v175 = vpop.f32.mrb[0].mxu0
    %176 = vdwg.mxu0
    %v177 = vtanh.pop %v174
    %v178 = vld [vmem:[#allocation8] sm:$0xff]
    %v179 = vld [vmem:[#allocation8 + $0x8] sm:$0xff]
    %v180 = vld [vmem:[#allocation8 + $0x10] sm:$0xff]
    %v181 = vld [vmem:[#allocation8 + $0x18] sm:$0xff]
    %v182 = vld [vmem:[#allocation8 + $0x20] sm:$0xff]
    %v183 = vld [vmem:[#allocation8 + $0x28] sm:$0xff]
    %v184 = vld [vmem:[#allocation8 + $0x30] sm:$0xff]
    %v185 = vld [vmem:[#allocation8 + $0x38] sm:$0xff]
    %v186 = vld [vmem:[#allocation8 + $0x40] sm:$0xff]
    %v187 = vld [vmem:[#allocation8 + $0x48] sm:$0xff]
    %v188 = vld [vmem:[#allocation8 + $0x50] sm:$0xff]
    %v189 = vld [vmem:[#allocation8 + $0x58] sm:$0xff]
    %v190 = vld [vmem:[#allocation8 + $0x60] sm:$0xff]
    %v191 = vld [vmem:[#allocation8 + $0x68] sm:$0xff]
    %v192 = vld [vmem:[#allocation8 + $0x70] sm:$0xff]
    %v193 = vld [vmem:[#allocation8 + $0x78] sm:$0xff]
    %v194 = vld [vmem:[#allocation5 + $0x1] sm:$0x1]
    %v195 = vlaneseq
    %v196 = vshrl.u32 %v195, 7
    %v197 = vsub.s32 0, %v196
    %v198 = vrot.slane %v194, %v197
    %199 = vmatprep.subr.mxu0 0.0
    %200 = vmatpush1.msra.mxu0 %v178
    %201 = vmatprep.subr.mxu0 0.0
    %202 = vmatpush1.msra.mxu0 %v179
    %203 = vmatprep.subr.mxu0 0.0
    %204 = vmatpush1.msra.mxu0 %v180
    %205 = vmatprep.subr.mxu0 0.0
    %206 = vmatpush1.msra.mxu0 %v181
    %207 = vmatprep.subr.mxu0 0.0
    %208 = vmatpush1.msra.mxu0 %v182
    %209 = vmatprep.subr.mxu0 0.0
    %210 = vmatpush1.msra.mxu0 %v183
    %211 = vmatprep.subr.mxu0 0.0
    %212 = vmatpush1.msra.mxu0 %v184
    %213 = vmatprep.subr.mxu0 0.0
    %214 = vmatpush1.msra.mxu0 %v185
    %215 = vmatprep.subr.mxu0 0.0
    %216 = vmatpush1.msra.mxu0 %v186
    %217 = vmatprep.subr.mxu0 0.0
    %218 = vmatpush1.msra.mxu0 %v187
    %219 = vmatprep.subr.mxu0 0.0
    %220 = vmatpush1.msra.mxu0 %v188
    %221 = vmatprep.subr.mxu0 0.0
    %222 = vmatpush1.msra.mxu0 %v189
    %223 = vmatprep.subr.mxu0 0.0
    %224 = vmatpush1.msra.mxu0 %v190
    %225 = vmatprep.subr.mxu0 0.0
    %226 = vmatpush1.msra.mxu0 %v191
    %227 = vmatprep.subr.mxu0 0.0
    %228 = vmatpush1.msra.mxu0 %v192
    %229 = vmatprep.subr.mxu0 0.0
    %230 = vmatpush1.msra.mxu0 %v193
    %231 = vmatprep.subr.mxu0 0.0
    %232 = vmatpush1.msra.mxu0 0.0
    %233 = vmatprep.subr.mxu0 0.0
    %234 = vmatpush1.msra.mxu0 0.0
    %235 = vmatprep.subr.mxu0 0.0
    %236 = vmatpush1.msra.mxu0 0.0
    %237 = vmatprep.subr.mxu0 0.0
    %238 = vmatpush1.msra.mxu0 0.0
    %239 = vmatprep.subr.mxu0 0.0
    %240 = vmatpush1.msra.mxu0 0.0
    %241 = vmatprep.subr.mxu0 0.0
    %242 = vmatpush1.msra.mxu0 0.0
    %243 = vmatprep.subr.mxu0 0.0
    %244 = vmatpush1.msra.mxu0 0.0
    %245 = vmatprep.subr.mxu0 0.0
    %246 = vmatpush1.msra.mxu0 0.0
    %247 = vmatprep.subr.mxu0 0.0
    %248 = vmatpush1.msra.mxu0 0.0
    %249 = vmatprep.subr.mxu0 0.0
    %250 = vmatpush1.msra.mxu0 0.0
    %251 = vmatprep.subr.mxu0 0.0
    %252 = vmatpush1.msra.mxu0 0.0
    %253 = vmatprep.subr.mxu0 0.0
    %254 = vmatpush1.msra.mxu0 0.0
    %255 = vmatprep.subr.mxu0 0.0
    %256 = vmatpush1.msra.mxu0 0.0
    %257 = vmatprep.subr.mxu0 0.0
    %258 = vmatpush1.msra.mxu0 0.0
    %259 = vmatprep.subr.mxu0 0.0
    %260 = vmatpush1.msra.mxu0 0.0
    %261 = vmatprep.subr.mxu0 0.0
    %262 = vmatpush1.msra.mxu0 0.0
    %263 = vmatprep.mubr.f32.mxu0 0.0
    %264 = vmatmul.mubr.f32.gmra.mrb[0].mxu0 %v177
    %v265 = vpop.f32.mrb[0].mxu0
    %v266 = vadd.f32 %v198, %v265
    %v267 = vpop.f32.mrb[0].mxu0
    %268 = vdwg.mxu0
    %v269 = vtanh.pop %v266
    %v270 = vld [vmem:[#allocation10] sm:$0xff]
    %v271 = vld [vmem:[#allocation10 + $0x8] sm:$0xff]
    %v272 = vld [vmem:[#allocation10 + $0x10] sm:$0xff]
    %v273 = vld [vmem:[#allocation10 + $0x18] sm:$0xff]
    %v274 = vld [vmem:[#allocation10 + $0x20] sm:$0xff]
    %v275 = vld [vmem:[#allocation10 + $0x28] sm:$0xff]
    %v276 = vld [vmem:[#allocation10 + $0x30] sm:$0xff]
    %v277 = vld [vmem:[#allocation10 + $0x38] sm:$0xff]
    %v278 = vld [vmem:[#allocation10 + $0x40] sm:$0xff]
    %v279 = vld [vmem:[#allocation10 + $0x48] sm:$0xff]
    %v280 = vld [vmem:[#allocation10 + $0x50] sm:$0xff]
    %v281 = vld [vmem:[#allocation10 + $0x58] sm:$0xff]
    %v282 = vld [vmem:[#allocation10 + $0x60] sm:$0xff]
    %v283 = vld [vmem:[#allocation10 + $0x68] sm:$0xff]
    %v284 = vld [vmem:[#allocation10 + $0x70] sm:$0xff]
    %v285 = vld [vmem:[#allocation10 + $0x78] sm:$0xff]
    %v286 = vld [vmem:[#allocation5 + $0x2] sm:$0x1]
    %v287 = vlaneseq
    %v288 = vshrl.u32 %v287, 7
    %v289 = vsub.s32 0, %v288
    %v290 = vrot.slane %v286, %v289
    %291 = vmatprep.subr.mxu0 0.0
    %292 = vmatpush1.msra.mxu0 %v270
    %293 = vmatprep.subr.mxu0 0.0
    %294 = vmatpush1.msra.mxu0 %v271
    %295 = vmatprep.subr.mxu0 0.0
    %296 = vmatpush1.msra.mxu0 %v272
    %297 = vmatprep.subr.mxu0 0.0
    %298 = vmatpush1.msra.mxu0 %v273
    %299 = vmatprep.subr.mxu0 0.0
    %300 = vmatpush1.msra.mxu0 %v274
    %301 = vmatprep.subr.mxu0 0.0
    %302 = vmatpush1.msra.mxu0 %v275
    %303 = vmatprep.subr.mxu0 0.0
    %304 = vmatpush1.msra.mxu0 %v276
    %305 = vmatprep.subr.mxu0 0.0
    %306 = vmatpush1.msra.mxu0 %v277
    %307 = vmatprep.subr.mxu0 0.0
    %308 = vmatpush1.msra.mxu0 %v278
    %309 = vmatprep.subr.mxu0 0.0
    %310 = vmatpush1.msra.mxu0 %v279
    %311 = vmatprep.subr.mxu0 0.0
    %312 = vmatpush1.msra.mxu0 %v280
    %313 = vmatprep.subr.mxu0 0.0
    %314 = vmatpush1.msra.mxu0 %v281
    %315 = vmatprep.subr.mxu0 0.0
    %316 = vmatpush1.msra.mxu0 %v282
    %317 = vmatprep.subr.mxu0 0.0
    %318 = vmatpush1.msra.mxu0 %v283
    %319 = vmatprep.subr.mxu0 0.0
    %320 = vmatpush1.msra.mxu0 %v284
    %321 = vmatprep.subr.mxu0 0.0
    %322 = vmatpush1.msra.mxu0 %v285
    %323 = vmatprep.subr.mxu0 0.0
    %324 = vmatpush1.msra.mxu0 0.0
    %325 = vmatprep.subr.mxu0 0.0
    %326 = vmatpush1.msra.mxu0 0.0
    %327 = vmatprep.subr.mxu0 0.0
    %328 = vmatpush1.msra.mxu0 0.0
    %329 = vmatprep.subr.mxu0 0.0
    %330 = vmatpush1.msra.mxu0 0.0
    %331 = vmatprep.subr.mxu0 0.0
    %332 = vmatpush1.msra.mxu0 0.0
    %333 = vmatprep.subr.mxu0 0.0
    %334 = vmatpush1.msra.mxu0 0.0
    %335 = vmatprep.subr.mxu0 0.0
    %336 = vmatpush1.msra.mxu0 0.0
    %337 = vmatprep.subr.mxu0 0.0
    %338 = vmatpush1.msra.mxu0 0.0
    %339 = vmatprep.subr.mxu0 0.0
    %340 = vmatpush1.msra.mxu0 0.0
    %341 = vmatprep.subr.mxu0 0.0
    %342 = vmatpush1.msra.mxu0 0.0
    %343 = vmatprep.subr.mxu0 0.0
    %344 = vmatpush1.msra.mxu0 0.0
    %345 = vmatprep.subr.mxu0 0.0
    %346 = vmatpush1.msra.mxu0 0.0
    %347 = vmatprep.subr.mxu0 0.0
    %348 = vmatpush1.msra.mxu0 0.0
    %349 = vmatprep.subr.mxu0 0.0
    %350 = vmatpush1.msra.mxu0 0.0
    %351 = vmatprep.subr.mxu0 0.0
    %352 = vmatpush1.msra.mxu0 0.0
    %353 = vmatprep.subr.mxu0 0.0
    %354 = vmatpush1.msra.mxu0 0.0
    %355 = vmatprep.mubr.f32.mxu0 0.0
    %356 = vmatmul.mubr.f32.gmra.mrb[0].mxu0 %v269
    %v357 = vpop.f32.mrb[0].mxu0
    %v358 = vadd.f32 %v290, %v357
    %v359 = vpop.f32.mrb[0].mxu0
    %360 = vdwg.mxu0
    %v361 = vtanh.pop %v358
    %362 = vst [vmem:[#allocation11] sm:$0xff] %v361
    // Predicated region
    $region42: #{tpu_custom_call.1} parent=1 // pred_check
      _
    $region43: #{tpu_custom_call.1} parent=1 // pred_check_branch
      %364 = sbr.rel (0) target = $region45
    $region44: #{tpu_custom_call.1} parent=1 // pred_region
      %s366 = ssub.s32 128, 128
      %367 = vsyncadd [#allocation4], %s366
      %s369 = sshll.u32 [#allocation11], 4
      %s370 = int_to_ptr.vmem [resolvable:$true] %s369
      %372 = dma.vmem_to_hbm [thread:$0]  %s370, 128, %s5, [#allocation4]
    $region45: #{tpu_custom_call.1} parent=1 // pred_fallthru
      _
    // Predicated region
    $region46: #{tpu_custom_call.1} parent=1 // pred_check
      _
    $region47: #{tpu_custom_call.1} parent=1 // pred_check_branch
      %374 = sbr.rel (0) target = $region49
    $region48: #{tpu_custom_call.1} parent=1 // pred_region
      %375 = dma.done [#allocation4], 128
    $region49: #{tpu_custom_call.1} parent=1 // pred_fallthru
      _
    %376 = vsyncpa [#allocation3], 1
    %377 = vsyncpa [#allocation6], 1
    %378 = vsyncpa [#allocation9], 1
    %379 = vsyncpa [#allocation4], 1

</llo_original>
